<compile_context>
chip_gen: v6e
topology: v6e:2x2x1
jax: 0.10.0
libtpu: 0.0.40
codegen_flags: <defaults>
</compile_context>

<pallas_src>
import jax
import jax.numpy as jnp
from jax.experimental import pallas as pl
from jax.experimental.pallas import tpu as pltpu
import numpy as np


def time_embed_kernel(pe_ref, w_ref, b_ref, o_ref):
    # pe_ref: [1, max_len, D]; w_ref: [2, D, D] (pre-transposed to [in, out]);
    # b_ref: [2, 1, D]; o_ref: [max_len, D]
    x = pe_ref[0]                                                   # [max_len, D]
    # Linear 1:  x @ W1 + b1   (MXU, f32 accumulation)
    h = jnp.dot(x, w_ref[0], preferred_element_type=jnp.float32) + b_ref[0]
    # SiLU (x * sigmoid(x)) — f32 on VPU/EUP
    h = h * jax.nn.sigmoid(h)
    # Linear 2:  h @ W2 + b2
    o = jnp.dot(h, w_ref[1], preferred_element_type=jnp.float32) + b_ref[1]
    o_ref[...] = o.astype(o_ref.dtype)


def _time_embed_full(pe, w_stack, b_stack):
    """Embed ALL max_len positions. Shapes fixed -> compiled exactly once."""
    _, max_len, D = pe.shape
    out = pl.pallas_call(
        time_embed_kernel,
        out_shape=jax.ShapeDtypeStruct((max_len, D), pe.dtype),
        in_specs=[
            pl.BlockSpec(memory_space=pltpu.MemorySpace.VMEM),  # pe      [1, max_len, D]
            pl.BlockSpec(memory_space=pltpu.MemorySpace.VMEM),  # w_stack [2, D, D]
            pl.BlockSpec(memory_space=pltpu.MemorySpace.VMEM),  # b_stack [2, 1, D]
        ],
        out_specs=pl.BlockSpec(memory_space=pltpu.MemorySpace.VMEM),
    )(pe, w_stack, b_stack)
    return out[None]                                               # [1, max_len, D]


# jit once; keyed only on (max_len, D) shapes, never on `timesteps`.
_time_embed_full_jit = jax.jit(_time_embed_full)


def prepare_params(w1, b1, w2, b2):
    """One-time host-side prep: transpose PyTorch [out, in] weights to [in, out],
    stack both layers' weights / biases into single arrays for fewer kernel
    operands; biases become [1, D] rows for lane-aligned broadcast."""
    D = w1.shape[1]
    w_stack = jnp.stack([w1.T, w2.T], axis=0)                     # [2, D, D]
    b_stack = jnp.stack([b1.reshape(1, D), b2.reshape(1, D)], 0)  # [2, 1, D]
    return w_stack, b_stack


def timestep_embedder_forward(pe, timesteps, w_stack, b_stack):
    """pe: [1, max_len, D]; timesteps: python int; returns [1, timesteps, D].

    The Pallas kernel always computes the full max_len rows (compile-once);
    `timesteps` only selects a prefix of the result (cheap slice; extra rows
    beyond `timesteps` are negligible at these sizes)."""
    full = _time_embed_full_jit(pe, w_stack, b_stack)             # [1, max_len, D]
    return full[:, :timesteps, :]


def make_sinusoidal_pe(max_len, d_model, dtype=jnp.float32):
    """Standard sinusoidal positional encoding, shape [1, max_len, d_model]."""
    position = np.arange(max_len)[:, None].astype(np.float64)
    div_term = np.exp(np.arange(0, d_model, 2).astype(np.float64)
                      * (-np.log(10000.0) / d_model))
    pe = np.zeros((max_len, d_model), dtype=np.float64)
    pe[:, 0::2] = np.sin(position * div_term)
    pe[:, 1::2] = np.cos(position * div_term)
    return jnp.asarray(pe[None], dtype=dtype)


if __name__ == "__main__":
    latent_dim = 32      # hidden size D
    max_len = 16         # pos-encoder buffer length
    timesteps = 8        # slice length T

    # Deterministic parameter init (synthetic weights; shapes from nn.Linear(D, D)).
    key = jax.random.PRNGKey(0)
    k1, k2, k3, k4 = jax.random.split(key, 4)
    w1 = 0.02 * jax.random.normal(k1, (latent_dim, latent_dim), jnp.float32)
    b1 = 0.02 * jax.random.normal(k2, (latent_dim,), jnp.float32)
    w2 = 0.02 * jax.random.normal(k3, (latent_dim, latent_dim), jnp.float32)
    b2 = 0.02 * jax.random.normal(k4, (latent_dim,), jnp.float32)

    pe = make_sinusoidal_pe(max_len, latent_dim)                  # [1, max_len, D]
    w_stack, b_stack = prepare_params(w1, b1, w2, b2)             # one-time prep

    # Pure-JAX reference (PyTorch semantics: y = x @ W.T + b).
    def reference(T):
        x_ref = pe[:, :T, :]
        h_ref = x_ref @ w1.T + b1
        h_ref = h_ref * jax.nn.sigmoid(h_ref)
        return h_ref @ w2.T + b2

    # Call with two different `timesteps` values — same compiled Pallas kernel.
    for T in (timesteps, max_len):
        out = timestep_embedder_forward(pe, T, w_stack, b_stack)
        out = jax.block_until_ready(out)
        ref = reference(T)
        assert out.shape == (1, T, latent_dim), out.shape
        assert jnp.allclose(out, ref, atol=1e-5, rtol=1e-5), f"mismatch vs reference at T={T}"

    # TODO(synk): at real model dims, fuse this embedder into the consuming
    # transformer block (or pad D to a multiple of 128 for lane-dense stores) —
    # as a standalone call it is bound by fixed pallas_call launch overhead.
    print("KERNEL_OK")
</pallas_src>

<mosaic_0001>
module attributes {stable_mosaic.version = 11 : i64} {
  func.func @time_embed_kernel(%arg0: memref<1x16x32xf32, #tpu.memory_space<vmem>>, %arg1: memref<2x32x32xf32, #tpu.memory_space<vmem>>, %arg2: memref<2x1x32xf32, #tpu.memory_space<vmem>>, %arg3: memref<16x32xf32, #tpu.memory_space<vmem>>) attributes {dimension_semantics = [], scalar_prefetch = 0 : i64, scratch_operands = 0 : i64, tpu.core_type = #tpu.core_type<tc>} {
    %c0 = arith.constant 0 : index
    %c0_0 = arith.constant 0 : index
    %c0_1 = arith.constant 0 : index
    %0 = vector.load %arg0[%c0, %c0_0, %c0_1] : memref<1x16x32xf32, #tpu.memory_space<vmem>>, vector<1x16x32xf32>
    %1 = vector.shape_cast %0 : vector<1x16x32xf32> to vector<16x32xf32>
    %c0_2 = arith.constant 0 : index
    %c0_3 = arith.constant 0 : index
    %c0_4 = arith.constant 0 : index
    %2 = vector.load %arg1[%c0_2, %c0_3, %c0_4] : memref<2x32x32xf32, #tpu.memory_space<vmem>>, vector<1x32x32xf32>
    %3 = vector.shape_cast %2 : vector<1x32x32xf32> to vector<32x32xf32>
    %cst = arith.constant dense<0.000000e+00> : vector<16x32xf32>
    %4 = tpu.matmul %1, %3, %cst {dimension_numbers = #tpu.dot_dimension_numbers<[1], [0], [0], [1], [0, 0, 1, 1], [], []>} : vector<16x32xf32>, vector<32x32xf32>, vector<16x32xf32> -> vector<16x32xf32>
    %c0_5 = arith.constant 0 : index
    %c0_6 = arith.constant 0 : index
    %c0_7 = arith.constant 0 : index
    %5 = vector.load %arg2[%c0_5, %c0_6, %c0_7] : memref<2x1x32xf32, #tpu.memory_space<vmem>>, vector<1x1x32xf32>
    %6 = vector.shape_cast %5 : vector<1x1x32xf32> to vector<1x32xf32>
    %7 = vector.broadcast %6 : vector<1x32xf32> to vector<16x32xf32>
    %8 = arith.addf %4, %7 : vector<16x32xf32>
    %9 = arith.negf %8 : vector<16x32xf32>
    %10 = math.exp %9 : vector<16x32xf32>
    %cst_8 = arith.constant 1.000000e+00 : f32
    %11 = vector.broadcast %cst_8 : f32 to vector<16x32xf32>
    %12 = arith.addf %11, %10 : vector<16x32xf32>
    %13 = arith.divf %11, %12 : vector<16x32xf32>
    %14 = arith.mulf %8, %13 : vector<16x32xf32>
    %c1 = arith.constant 1 : index
    %c0_9 = arith.constant 0 : index
    %c0_10 = arith.constant 0 : index
    %15 = vector.load %arg1[%c1, %c0_9, %c0_10] : memref<2x32x32xf32, #tpu.memory_space<vmem>>, vector<1x32x32xf32>
    %16 = vector.shape_cast %15 : vector<1x32x32xf32> to vector<32x32xf32>
    %cst_11 = arith.constant dense<0.000000e+00> : vector<16x32xf32>
    %17 = tpu.matmul %14, %16, %cst_11 {dimension_numbers = #tpu.dot_dimension_numbers<[1], [0], [0], [1], [0, 0, 1, 1], [], []>} : vector<16x32xf32>, vector<32x32xf32>, vector<16x32xf32> -> vector<16x32xf32>
    %c1_12 = arith.constant 1 : index
    %c0_13 = arith.constant 0 : index
    %c0_14 = arith.constant 0 : index
    %18 = vector.load %arg2[%c1_12, %c0_13, %c0_14] : memref<2x1x32xf32, #tpu.memory_space<vmem>>, vector<1x1x32xf32>
    %19 = vector.shape_cast %18 : vector<1x1x32xf32> to vector<1x32xf32>
    %20 = vector.broadcast %19 : vector<1x32xf32> to vector<16x32xf32>
    %21 = arith.addf %17, %20 : vector<16x32xf32>
    %c0_15 = arith.constant 0 : index
    %c0_16 = arith.constant 0 : index
    %22 = vector.load %arg3[%c0_15, %c0_16] : memref<16x32xf32, #tpu.memory_space<vmem>>, vector<16x32xf32>
    tpu.vector_store %arg3[%c0_15, %c0_16], %21 {strides = array<i32>} : memref<16x32xf32, #tpu.memory_space<vmem>>, vector<16x32xf32>,
    return
  }
}

</mosaic_0001>

<llo_original>
// kernel: _time_embed_full.1
$region0: #{_time_embed_full.1}
  #allocation0 [shape = 'u32[]', space=smem, size = 0x4, offset = 0x4, fixed_abs, tag = 'smem constant byte address 0x4 - core index']
  #allocation1 [shape = 'u32[144,128]{1,0:T(1,128)}', space=vmem, size = 0x12000, scoped, tag = 'internal scratch']
  %s0 = inlined_call_operand.hbm [shape: f32[1,16,32], index: 0, kind: input, shape index: {}]
  %s1 = inlined_call_operand.hbm [shape: f32[2,32,32], index: 1, kind: input, shape index: {}]
  %s2 = inlined_call_operand.vmem [shape: f32[2,1,32], index: 2, kind: input, shape index: {}]
  %s3 = inlined_call_operand.hbm [shape: f32[16,32], index: 3, kind: output, shape index: {}]
  %s4 = sld [smem:[#allocation0]]
  $region30: #{_time_embed_full.1} parent=0
    _
  %s6 = ssub.s32 1, %s4
  %s7 = scalar_select 0, %s6, %s4
  $region1: #{_time_embed_full.1} parent=0
    #allocation2 [shape = 'u8[8192]{0}', space=vmem, size = 0x2000, scoped, tag = 'input window, operand 0, single buffered']
    #allocation3 [shape = 's32[1]{0}', space=sflag, size = 0x4, scoped, tag = 'scoped memory for _time_embed_full.1']
    #allocation4 [shape = 's32[1]{0}', space=sflag, size = 0x4, scoped, tag = 'scoped memory for _time_embed_full.1']
    #allocation5 [shape = 'u8[32768]{0}', space=vmem, size = 0x8000, scoped, tag = 'input window, operand 1, single buffered']
    #allocation6 [shape = 's32[1]{0}', space=sflag, size = 0x4, scoped, tag = 'scoped memory for _time_embed_full.1']
    #allocation7 [shape = 'u8[8192]{0}', space=vmem, size = 0x2000, scoped, tag = 'output window, operand 0, single buffered']
    %8 = vsyncpa [#allocation3], 0
    %9 = vsyncpa [#allocation6], 0
    %10 = vsyncpa [#allocation4], 0
    // Predicated region
    $region2: #{_time_embed_full.1} parent=1 // pred_check
      _
    $region3: #{_time_embed_full.1} parent=1 // pred_check_branch
      %12 = sbr.rel (0) target = $region5
    $region4: #{_time_embed_full.1} parent=1 // pred_region
      %s14 = ssub.s32 256, 256
      %15 = vsyncadd [#allocation3], %s14
      %s16 = sshll.u32 [#allocation2], 4
      %s17 = int_to_ptr.vmem [resolvable:$true] %s16
      %22 = dma.hbm_to_vmem [thread:$0]  %s0, 256, %s17, [#allocation3], 128, 128, 8
    $region5: #{_time_embed_full.1} parent=1 // pred_fallthru
      _
    // Predicated region
    $region6: #{_time_embed_full.1} parent=1 // pred_check
      _
    $region7: #{_time_embed_full.1} parent=1 // pred_check_branch
      %24 = sbr.rel (0) target = $region9
    $region8: #{_time_embed_full.1} parent=1 // pred_region
      %s26 = ssub.s32 1024, 1024
      %27 = vsyncadd [#allocation6], %s26
      %s28 = sshll.u32 [#allocation5], 4
      %s29 = int_to_ptr.vmem [resolvable:$true] %s28
      %34 = dma.hbm_to_vmem [thread:$0]  %s1, 1024, %s29, [#allocation6], 128, 128, 8
    $region9: #{_time_embed_full.1} parent=1 // pred_fallthru
      _
    // Predicated region
    $region10: #{_time_embed_full.1} parent=1 // pred_check
      _
    $region11: #{_time_embed_full.1} parent=1 // pred_check_branch
      %36 = sbr.rel (0) target = $region13
    $region12: #{_time_embed_full.1} parent=1 // pred_region
      _
    $region13: #{_time_embed_full.1} parent=1 // pred_fallthru
      _
    // Predicated region
    $region14: #{_time_embed_full.1} parent=1 // pred_check
      _
    $region15: #{_time_embed_full.1} parent=1 // pred_check_branch
      %38 = sbr.rel (0) target = $region17
    $region16: #{_time_embed_full.1} parent=1 // pred_region
      %39 = dma.done [#allocation3], 256
    $region17: #{_time_embed_full.1} parent=1 // pred_fallthru
      _
    // Predicated region
    $region18: #{_time_embed_full.1} parent=1 // pred_check
      _
    $region19: #{_time_embed_full.1} parent=1 // pred_check_branch
      %41 = sbr.rel (0) target = $region21
    $region20: #{_time_embed_full.1} parent=1 // pred_region
      %42 = dma.done [#allocation6], 1024
    $region21: #{_time_embed_full.1} parent=1 // pred_fallthru
      _
    %v43 = vld [vmem:[#allocation2] sm:$0xff]
    %v44 = vld [vmem:[#allocation2 + $0x8] sm:$0xff]
    %v45 = vld [vmem:[#allocation5] sm:$0xff]
    %v46 = vld [vmem:[#allocation5 + $0x8] sm:$0xff]
    %v47 = vld [vmem:[#allocation5 + $0x10] sm:$0xff]
    %v48 = vld [vmem:[#allocation5 + $0x18] sm:$0xff]
    %v49 = vld [vmem:[%s2] sm:$0x1]
    %v51 = vlaneseq
    %v52 = vshrl.u32 %v51, 7
    %v53 = vsub.s32 0, %v52
    %v54 = vrot.slane %v49, %v53
    %vm56 = vcmask 261120
    %v58 = vsel %vm56, %v43, 0
    %v61 = vsel %vm56, %v44, 0
    %63 = vmatprep.subr.mxu0 0.0
    %64 = vmatpush1.msra.mxu0 0.0
    %65 = vmatprep.subr.mxu0 0.0
    %66 = vmatpush1.msra.mxu0 0.0
    %67 = vmatprep.subr.mxu0 0.0
    %68 = vmatpush1.msra.mxu0 0.0
    %69 = vmatprep.subr.mxu0 0.0
    %70 = vmatpush1.msra.mxu0 0.0
    %71 = vmatprep.subr.mxu0 0.0
    %72 = vmatpush1.msra.mxu0 0.0
    %73 = vmatprep.subr.mxu0 0.0
    %74 = vmatpush1.msra.mxu0 0.0
    %75 = vmatprep.subr.mxu0 0.0
    %76 = vmatpush1.msra.mxu0 0.0
    %77 = vmatprep.subr.mxu0 0.0
    %78 = vmatpush1.msra.mxu0 0.0
    %79 = vmatprep.subr.mxu0 0.0
    %80 = vmatpush1.msra.mxu0 0.0
    %81 = vmatprep.subr.mxu0 0.0
    %82 = vmatpush1.msra.mxu0 0.0
    %83 = vmatprep.subr.mxu0 0.0
    %84 = vmatpush1.msra.mxu0 0.0
    %85 = vmatprep.subr.mxu0 0.0
    %86 = vmatpush1.msra.mxu0 0.0
    %87 = vmatprep.subr.mxu0 0.0
    %88 = vmatpush1.msra.mxu0 %v48
    %89 = vmatprep.subr.mxu0 0.0
    %90 = vmatpush1.msra.mxu0 %v47
    %91 = vmatprep.subr.mxu0 0.0
    %92 = vmatpush1.msra.mxu0 %v46
    %93 = vmatprep.subr.mxu0 0.0
    %94 = vmatpush1.msra.mxu0 %v45
    %95 = vmatprep.subr.mxu0 0.0
    %96 = vmatpush2.msra.mxu0 0.0
    %97 = vmatprep.subr.mxu0 0.0
    %98 = vmatpush2.msra.mxu0 0.0
    %99 = vmatprep.subr.mxu0 0.0
    %100 = vmatpush2.msra.mxu0 0.0
    %101 = vmatprep.subr.mxu0 0.0
    %102 = vmatpush2.msra.mxu0 0.0
    %103 = vmatprep.subr.mxu0 0.0
    %104 = vmatpush2.msra.mxu0 0.0
    %105 = vmatprep.subr.mxu0 0.0
    %106 = vmatpush2.msra.mxu0 0.0
    %107 = vmatprep.subr.mxu0 0.0
    %108 = vmatpush2.msra.mxu0 0.0
    %109 = vmatprep.subr.mxu0 0.0
    %110 = vmatpush2.msra.mxu0 0.0
    %111 = vmatprep.subr.mxu0 0.0
    %112 = vmatpush2.msra.mxu0 0.0
    %113 = vmatprep.subr.mxu0 0.0
    %114 = vmatpush2.msra.mxu0 0.0
    %115 = vmatprep.subr.mxu0 0.0
    %116 = vmatpush2.msra.mxu0 0.0
    %117 = vmatprep.subr.mxu0 0.0
    %118 = vmatpush2.msra.mxu0 0.0
    %119 = vmatprep.subr.mxu0 0.0
    %120 = vmatpush2.msra.mxu0 0.0
    %121 = vmatprep.subr.mxu0 0.0
    %122 = vmatpush2.msra.mxu0 0.0
    %123 = vmatprep.subr.mxu0 0.0
    %124 = vmatpush2.msra.mxu0 0.0
    %125 = vmatprep.subr.mxu0 0.0
    %126 = vmatpush2.msra.mxu0 0.0
    %127 = vmatprep.mubr.f32.mxu0 0.0
    %128 = vmatmul.mubr.f32.gmra.mxu0 %v58
    %v129 = vpop.f32.mrf.mxu0
    %v130 = vadd.f32 %v54, %v129
    %v131 = vpop.f32.mrf.mxu0
    %132 = vmatprep.mubr.f32.mxu0 0.0
    %133 = vmatmul.mubr.f32.gmra.mxu0 %v61
    %v134 = vpop.f32.mrf.mxu0
    %v135 = vadd.f32 %v54, %v134
    %v136 = vpop.f32.mrf.mxu0
    %137 = vdwg.mxu0
    %v138 = vxor.u32 %v130, 2147483648
    %v139 = vxor.u32 %v135, 2147483648
    %v140 = vmul.f32 %v138, 1.442695
    %v141 = vpow.pop %v140
    %v142 = vmul.f32 %v139, 1.442695
    %v143 = vpow.pop %v142
    %v144 = vadd.f32 %v141, 1.0
    %v145 = vadd.f32 %v143, 1.0
    %v146 = vrcp.pop %v144
    %v147 = vmul.f32 1.0, %v146
    %v148 = vrcp.pop %v145
    %v149 = vmul.f32 1.0, %v148
    %v150 = vmul.f32 %v130, %v147
    %v151 = vmul.f32 %v135, %v149
    %s152 = scalar_lea.vmem [#allocation5], 32
    %v153 = vld [vmem:[%s152] sm:$0xff]
    %v154 = vld [vmem:[%s152 + $0x8] sm:$0xff]
    %v155 = vld [vmem:[%s152 + $0x10] sm:$0xff]
    %v156 = vld [vmem:[%s152 + $0x18] sm:$0xff]
    %s157 = scalar_lea.vmem %s2, 1
    %v158 = vld [vmem:[%s157] sm:$0x1]
    %v160 = vlaneseq
    %v161 = vshrl.u32 %v160, 7
    %v162 = vsub.s32 0, %v161
    %v163 = vrot.slane %v158, %v162
    %v166 = vsel %vm56, %v150, 0
    %v169 = vsel %vm56, %v151, 0
    %171 = vmatprep.subr.mxu0 0.0
    %172 = vmatpush1.msra.mxu0 0.0
    %173 = vmatprep.subr.mxu0 0.0
    %174 = vmatpush1.msra.mxu0 0.0
    %175 = vmatprep.subr.mxu0 0.0
    %176 = vmatpush1.msra.mxu0 0.0
    %177 = vmatprep.subr.mxu0 0.0
    %178 = vmatpush1.msra.mxu0 0.0
    %179 = vmatprep.subr.mxu0 0.0
    %180 = vmatpush1.msra.mxu0 0.0
    %181 = vmatprep.subr.mxu0 0.0
    %182 = vmatpush1.msra.mxu0 0.0
    %183 = vmatprep.subr.mxu0 0.0
    %184 = vmatpush1.msra.mxu0 0.0
    %185 = vmatprep.subr.mxu0 0.0
    %186 = vmatpush1.msra.mxu0 0.0
    %187 = vmatprep.subr.mxu0 0.0
    %188 = vmatpush1.msra.mxu0 0.0
    %189 = vmatprep.subr.mxu0 0.0
    %190 = vmatpush1.msra.mxu0 0.0
    %191 = vmatprep.subr.mxu0 0.0
    %192 = vmatpush1.msra.mxu0 0.0
    %193 = vmatprep.subr.mxu0 0.0
    %194 = vmatpush1.msra.mxu0 0.0
    %195 = vmatprep.subr.mxu0 0.0
    %196 = vmatpush1.msra.mxu0 %v156
    %197 = vmatprep.subr.mxu0 0.0
    %198 = vmatpush1.msra.mxu0 %v155
    %199 = vmatprep.subr.mxu0 0.0
    %200 = vmatpush1.msra.mxu0 %v154
    %201 = vmatprep.subr.mxu0 0.0
    %202 = vmatpush1.msra.mxu0 %v153
    %203 = vmatprep.subr.mxu0 0.0
    %204 = vmatpush2.msra.mxu0 0.0
    %205 = vmatprep.subr.mxu0 0.0
    %206 = vmatpush2.msra.mxu0 0.0
    %207 = vmatprep.subr.mxu0 0.0
    %208 = vmatpush2.msra.mxu0 0.0
    %209 = vmatprep.subr.mxu0 0.0
    %210 = vmatpush2.msra.mxu0 0.0
    %211 = vmatprep.subr.mxu0 0.0
    %212 = vmatpush2.msra.mxu0 0.0
    %213 = vmatprep.subr.mxu0 0.0
    %214 = vmatpush2.msra.mxu0 0.0
    %215 = vmatprep.subr.mxu0 0.0
    %216 = vmatpush2.msra.mxu0 0.0
    %217 = vmatprep.subr.mxu0 0.0
    %218 = vmatpush2.msra.mxu0 0.0
    %219 = vmatprep.subr.mxu0 0.0
    %220 = vmatpush2.msra.mxu0 0.0
    %221 = vmatprep.subr.mxu0 0.0
    %222 = vmatpush2.msra.mxu0 0.0
    %223 = vmatprep.subr.mxu0 0.0
    %224 = vmatpush2.msra.mxu0 0.0
    %225 = vmatprep.subr.mxu0 0.0
    %226 = vmatpush2.msra.mxu0 0.0
    %227 = vmatprep.subr.mxu0 0.0
    %228 = vmatpush2.msra.mxu0 0.0
    %229 = vmatprep.subr.mxu0 0.0
    %230 = vmatpush2.msra.mxu0 0.0
    %231 = vmatprep.subr.mxu0 0.0
    %232 = vmatpush2.msra.mxu0 0.0
    %233 = vmatprep.subr.mxu0 0.0
    %234 = vmatpush2.msra.mxu0 0.0
    %235 = vmatprep.mubr.f32.mxu0 0.0
    %236 = vmatmul.mubr.f32.gmra.mxu0 %v166
    %v237 = vpop.f32.mrf.mxu0
    %v238 = vadd.f32 %v163, %v237
    %v239 = vpop.f32.mrf.mxu0
    %240 = vmatprep.mubr.f32.mxu0 0.0
    %241 = vmatmul.mubr.f32.gmra.mxu0 %v169
    %v242 = vpop.f32.mrf.mxu0
    %v243 = vadd.f32 %v163, %v242
    %v244 = vpop.f32.mrf.mxu0
    %245 = vdwg.mxu0
    %246 = vst.msk [vmem:[#allocation7] sm:$0xff] %vm56, %v238
    %247 = vst.msk [vmem:[#allocation7 + $0x8] sm:$0xff] %vm56, %v243
    // Predicated region
    $region22: #{_time_embed_full.1} parent=1 // pred_check
      _
    $region23: #{_time_embed_full.1} parent=1 // pred_check_branch
      %249 = sbr.rel (0) target = $region25
    $region24: #{_time_embed_full.1} parent=1 // pred_region
      %s251 = ssub.s32 256, 256
      %252 = vsyncadd [#allocation4], %s251
      %s253 = sshll.u32 [#allocation7], 4
      %s254 = int_to_ptr.vmem [resolvable:$true] %s253
      %259 = dma.vmem_to_hbm [thread:$0]  %s254, 256, %s3, [#allocation4], 128, 128, 8
    $region25: #{_time_embed_full.1} parent=1 // pred_fallthru
      _
    // Predicated region
    $region26: #{_time_embed_full.1} parent=1 // pred_check
      _
    $region27: #{_time_embed_full.1} parent=1 // pred_check_branch
      %261 = sbr.rel (0) target = $region29
    $region28: #{_time_embed_full.1} parent=1 // pred_region
      %262 = dma.done [#allocation4], 256
    $region29: #{_time_embed_full.1} parent=1 // pred_fallthru
      _
    %263 = vsyncpa [#allocation3], 1
    %264 = vsyncpa [#allocation6], 1
    %265 = vsyncpa [#allocation4], 1

</llo_original>
